<compile_context>
chip_gen: v5e
topology: v5e:2x2
jax: 0.10.0
libtpu: 0.0.40
codegen_flags: <defaults>
</compile_context>

<pallas_src>
import functools
import math

import jax
import jax.numpy as jnp
from jax import lax
from jax.experimental import pallas as pl
from jax.experimental.pallas import tpu as pltpu

_EPS = 1e-12        # F.normalize default eps
_NEG_INF = -1e30    # large negative (avoids inf-inf NaN paths)


def _round_up(x, m):
    return ((x + m - 1) // m) * m


def _cosface_kernel(x_ref, w_ref, t_ref, out_ref,
                    m_ref, l_ref, tgt_ref, xn_ref,
                    *, s, margin, num_classes, tc, mask_pad):
    """One (N tile, C tile) grid step of the streaming CosFace loss.

    x_ref:  (tn, D)  f32   input features (same block across all C tiles)
    w_ref:  (D, tc)  bf16  pre-normalized, pre-transposed weight tile
    t_ref:  (tn, 1)  int32 targets
    """
    j = pl.program_id(1)
    last_j = pl.num_programs(1) - 1

    @pl.when(j == 0)
    def _init():
        # Normalize x in f32 once per N tile, store bf16 for the MXU.
        x0 = x_ref[...]
        sumsq = jnp.sum(x0 * x0, axis=-1, keepdims=True)
        inv = lax.rsqrt(jnp.maximum(sumsq, _EPS * _EPS))       # EUP
        xn_ref[...] = (x0 * inv).astype(jnp.bfloat16)
        m_ref[...] = jnp.full(m_ref.shape, _NEG_INF, dtype=jnp.float32)
        l_ref[...] = jnp.zeros(l_ref.shape, dtype=jnp.float32)
        tgt_ref[...] = jnp.zeros(tgt_ref.shape, dtype=jnp.float32)

    t = t_ref[...]                                              # (tn, 1) int32

    # MXU matmul in bf16 with f32 accumulation; both operands pre-normalized,
    # so this *is* the cosine — no post-scaling in the hot loop.
    cosine = jnp.dot(xn_ref[...], w_ref[...],
                     preferred_element_type=jnp.float32)        # (tn, tc)

    tn = cosine.shape[0]
    local_ids = lax.broadcasted_iota(jnp.int32, (tn, tc), 1)
    one_hot = local_ids == (t - j * tc)                         # (tn, tc)

    logits = jnp.where(one_hot, cosine - margin, cosine) * s
    if mask_pad:
        # Only emitted when C is not a tile multiple; padded columns exist only
        # in the last C tile, intermediate tiles see an all-true (1, tc) mask.
        col_ids = j * tc + lax.broadcasted_iota(jnp.int32, (1, tc), 1)
        logits = jnp.where(col_ids < num_classes, logits, _NEG_INF)

    # Streaming (online) log-sum-exp update.
    tile_max = jnp.max(logits, axis=-1, keepdims=True)          # (tn, 1)
    m_new = jnp.maximum(m_ref[...], tile_max)
    alpha = jnp.exp(m_ref[...] - m_new)
    l_ref[...] = alpha * l_ref[...] + jnp.sum(jnp.exp(logits - m_new),
                                              axis=-1, keepdims=True)
    m_ref[...] = m_new
    # Exactly one class matches per (valid) row across all C tiles.
    tgt_ref[...] += jnp.sum(jnp.where(one_hot, logits, 0.0),
                            axis=-1, keepdims=True)

    @pl.when(j == last_j)
    def _finalize():
        per_sample = m_ref[...] + jnp.log(l_ref[...]) - tgt_ref[...]   # (tn, 1)
        out_ref[...] = jnp.broadcast_to(per_sample, out_ref.shape)     # lane-dense


def cosface_loss(inputs, weight, targets, *, s=64.0, m=0.35, tn=256, tc=1024):
    """inputs: (N, D) float, weight: (C, D) float, targets: (N,) int -> scalar loss."""
    n, d = inputs.shape
    c, d_w = weight.shape
    assert d == d_w

    x = inputs.astype(jnp.float32)
    t = targets.reshape(n, 1).astype(jnp.int32)

    # Pre-normalize the weight rows in f32 (matches F.normalize eps), transpose
    # to (D, C) lane-dense in classes, ship as bf16 (halves the weight stream;
    # only the dot itself runs in bf16).
    w32 = weight.astype(jnp.float32)
    w_inv = lax.rsqrt(jnp.maximum(jnp.sum(w32 * w32, axis=-1, keepdims=True),
                                  _EPS * _EPS))
    w_t = jnp.transpose(w32 * w_inv).astype(jnp.bfloat16)        # (D, C)

    # Tile sizing: tn multiple of 8, tc multiple of 128 (or full extent).
    n_rounded = _round_up(n, 8)
    tn = max(8, min(tn, n_rounded))
    # Megacore (v7x): keep >= 2 N tiles on the "parallel" axis when the batch allows.
    if n_rounded >= 16 and n_rounded < 2 * tn:
        tn = max(8, _round_up((n_rounded + 1) // 2, 8))
    tc = max(128, min(tc, _round_up(c, 128)))

    n_pad = _round_up(n, tn)
    c_pad = _round_up(c, tc)

    if n_pad != n:
        x = jnp.pad(x, ((0, n_pad - n), (0, 0)))
        t = jnp.pad(t, ((0, n_pad - n), (0, 0)))
    if c_pad != c:
        w_t = jnp.pad(w_t, ((0, 0), (0, c_pad - c)))

    grid = (n_pad // tn, c_pad // tc)

    kernel = functools.partial(_cosface_kernel, s=float(s), margin=float(m),
                               num_classes=c, tc=tc, mask_pad=(c_pad != c))

    # VMEM footprint estimate (double-buffered inputs + live f32 intermediates)
    # so larger tiles don't silently trip the 32 MiB scoped default on v7x.
    vmem_estimate = (
        2 * d * tc * 2          # double-buffered bf16 W^T tile
        + 2 * tn * d * 4        # double-buffered f32 x tile
        + tn * d * 2            # bf16 normalized-x scratch
        + 2 * tn * 128 * 4      # output block
        + 3 * tn * 4            # per-row running scalars
        + 8 * tn * tc * 4       # live (tn, tc) f32 intermediates headroom
    )
    vmem_limit = int(min(max(vmem_estimate, 32 << 20), 100 << 20))

    # Weight is re-streamed once per N tile: count it truthfully.
    weight_stream_bytes = (n_pad // tn) * d * c_pad * 2          # bf16

    per_sample = pl.pallas_call(
        kernel,
        out_shape=jax.ShapeDtypeStruct((n_pad, 128), jnp.float32),
        grid=grid,
        in_specs=[
            pl.BlockSpec((tn, d), lambda i, j: (i, 0)),    # x tile (reused over C)
            pl.BlockSpec((d, tc), lambda i, j: (0, j)),    # streamed bf16 W^T tile
            pl.BlockSpec((tn, 1), lambda i, j: (i, 0)),    # targets tile
        ],
        out_specs=pl.BlockSpec((tn, 128), lambda i, j: (i, 0)),
        scratch_shapes=[
            pltpu.VMEM((tn, 1), jnp.float32),    # running row max
            pltpu.VMEM((tn, 1), jnp.float32),    # running sum-exp
            pltpu.VMEM((tn, 1), jnp.float32),    # accumulated target logit
            pltpu.VMEM((tn, d), jnp.bfloat16),   # normalized x (once per N tile)
        ],
        compiler_params=pltpu.CompilerParams(
            dimension_semantics=("parallel", "arbitrary"),
            vmem_limit_bytes=vmem_limit),
        cost_estimate=pl.CostEstimate(
            flops=2 * n_pad * c_pad * d,
            transcendentals=n_pad * c_pad,
            bytes_accessed=(weight_stream_bytes
                            + 4 * n_pad * d          # x
                            + 4 * n_pad               # targets
                            + 4 * n_pad * 128)),      # per-sample output
    )(x, w_t, t)

    # 'mean' reduction over the real (un-padded) batch.
    return jnp.mean(per_sample[:n, 0])


def _reference_loss(inputs, weight, targets, s=64.0, m=0.35):
    """Pure-JAX f32 reference mirroring the PyTorch module."""
    xn = inputs / jnp.maximum(jnp.linalg.norm(inputs, axis=-1, keepdims=True), _EPS)
    wn = weight / jnp.maximum(jnp.linalg.norm(weight, axis=-1, keepdims=True), _EPS)
    cosine = xn @ wn.T
    one_hot = jax.nn.one_hot(targets, weight.shape[0], dtype=jnp.float32)
    logits = jnp.where(one_hot.astype(bool), cosine - m, cosine) * s
    logp = jax.nn.log_softmax(logits, axis=-1)
    return -jnp.mean(jnp.sum(one_hot * logp, axis=-1))


if __name__ == "__main__":
    key = jax.random.PRNGKey(0)

    # --- Case 1: small shapes, single grid tile -------------------------------
    N, D, C = 8, 32, 16
    s1, m1 = 64.0, 0.35
    k_x, k_w, k_t, key = jax.random.split(key, 4)
    inputs = jax.random.normal(k_x, (N, D), dtype=jnp.float32)
    targets = jax.random.randint(k_t, (N,), 0, C, dtype=jnp.int32)
    bound = math.sqrt(6.0 / (D + C))            # xavier_uniform_ on (C, D)
    weight = jax.random.uniform(k_w, (C, D), dtype=jnp.float32,
                                minval=-bound, maxval=bound)

    loss = jax.block_until_ready(cosface_loss(inputs, weight, targets, s=s1, m=m1))
    ref = _reference_loss(inputs, weight, targets, s=s1, m=m1)
    # bf16 MXU operands shift the logits slightly vs the pure-f32 reference.
    assert jnp.isfinite(loss)
    assert jnp.allclose(loss, ref, rtol=5e-2, atol=5e-1), (loss, ref)

    # --- Case 2: multi-tile grid with N/C padding (exercises streaming LSE) ---
    N2, D2, C2 = 40, 64, 300
    s2, m2 = 30.0, 0.40
    k_x2, k_w2, k_t2, key = jax.random.split(key, 4)
    inputs2 = jax.random.normal(k_x2, (N2, D2), dtype=jnp.float32)
    targets2 = jax.random.randint(k_t2, (N2,), 0, C2, dtype=jnp.int32)
    bound2 = math.sqrt(6.0 / (D2 + C2))
    weight2 = jax.random.uniform(k_w2, (C2, D2), dtype=jnp.float32,
                                 minval=-bound2, maxval=bound2)

    loss2 = jax.block_until_ready(
        cosface_loss(inputs2, weight2, targets2, s=s2, m=m2, tn=16, tc=128))
    ref2 = _reference_loss(inputs2, weight2, targets2, s=s2, m=m2)
    assert jnp.isfinite(loss2)
    assert jnp.allclose(loss2, ref2, rtol=5e-2, atol=5e-1), (loss2, ref2)

    # --- Case 3: default (large) tiles on the same data, exercises tn split ---
    loss3 = jax.block_until_ready(
        cosface_loss(inputs2, weight2, targets2, s=s2, m=m2))
    assert jnp.isfinite(loss3)
    assert jnp.allclose(loss3, ref2, rtol=5e-2, atol=5e-1), (loss3, ref2)

    print("KERNEL_OK")
</pallas_src>

<mosaic_0001>
module attributes {stable_mosaic.version = 11 : i64} {
  func.func @_cosface_kernel(%arg0: i32, %arg1: i32, %arg2: memref<8x32xf32, #tpu.memory_space<vmem>>, %arg3: memref<32x128xbf16, #tpu.memory_space<vmem>>, %arg4: memref<8x1xi32, #tpu.memory_space<vmem>>, %arg5: memref<8x128xf32, #tpu.memory_space<vmem>>, %arg6: memref<8x1xf32, #tpu.memory_space<vmem>>, %arg7: memref<8x1xf32, #tpu.memory_space<vmem>>, %arg8: memref<8x1xf32, #tpu.memory_space<vmem>>, %arg9: memref<8x32xbf16, #tpu.memory_space<vmem>>) attributes {dimension_semantics = [#tpu.dimension_semantics<parallel>, #tpu.dimension_semantics<arbitrary>], iteration_bounds = array<i64: 1, 1>, scalar_prefetch = 0 : i64, scratch_operands = 4 : i64, tpu.core_type = #tpu.core_type<tc>, window_params = [{transform_indices = @transform_0, window_bounds = array<i64: 8, 32>}, {transform_indices = @transform_1, window_bounds = array<i64: 32, 128>}, {transform_indices = @transform_2, window_bounds = array<i64: 8, 1>}, {transform_indices = @transform_3, window_bounds = array<i64: 8, 128>}]} {
    %c0_i32 = arith.constant 0 : i32
    %0 = arith.cmpi eq, %arg1, %c0_i32 : i32
    %1 = arith.extui %0 : i1 to i32
    %c0_i32_0 = arith.constant 0 : i32
    %2 = arith.cmpi ne, %1, %c0_i32_0 : i32
    scf.if %2 {
      %c0_30 = arith.constant 0 : index
      %c0_31 = arith.constant 0 : index
      %55 = vector.load %arg2[%c0_30, %c0_31] : memref<8x32xf32, #tpu.memory_space<vmem>>, vector<8x32xf32>
      %56 = arith.mulf %55, %55 : vector<8x32xf32>
      %cst_32 = arith.constant dense<0.000000e+00> : vector<8xf32>
      %57 = vector.multi_reduction <add>, %56, %cst_32 [1] : vector<8x32xf32> to vector<8xf32>
      %58 = vector.shape_cast %57 : vector<8xf32> to vector<8x1xf32>
      %cst_33 = arith.constant 1.000000e-24 : f32
      %59 = vector.broadcast %cst_33 : f32 to vector<8x1xf32>
      %60 = arith.maximumf %58, %59 : vector<8x1xf32>
      %61 = math.rsqrt %60 : vector<8x1xf32>
      %62 = vector.broadcast %61 : vector<8x1xf32> to vector<8x32xf32>
      %63 = arith.mulf %55, %62 : vector<8x32xf32>
      %64 = arith.truncf %63 : vector<8x32xf32> to vector<8x32xbf16>
      %c0_34 = arith.constant 0 : index
      %c0_35 = arith.constant 0 : index
      %65 = vector.load %arg9[%c0_34, %c0_35] : memref<8x32xbf16, #tpu.memory_space<vmem>>, vector<8x32xbf16>
      tpu.vector_store %arg9[%c0_34, %c0_35], %64 {strides = array<i32>} : memref<8x32xbf16, #tpu.memory_space<vmem>>, vector<8x32xbf16>,
      %cst_36 = arith.constant -1.000000e+30 : f32
      %66 = vector.broadcast %cst_36 : f32 to vector<8x1xf32>
      %c0_37 = arith.constant 0 : index
      %c0_38 = arith.constant 0 : index
      %67 = vector.load %arg6[%c0_37, %c0_38] : memref<8x1xf32, #tpu.memory_space<vmem>>, vector<8x1xf32>
      tpu.vector_store %arg6[%c0_37, %c0_38], %66 {strides = array<i32>} : memref<8x1xf32, #tpu.memory_space<vmem>>, vector<8x1xf32>,
      %cst_39 = arith.constant 0.000000e+00 : f32
      %68 = vector.broadcast %cst_39 : f32 to vector<8x1xf32>
      %c0_40 = arith.constant 0 : index
      %c0_41 = arith.constant 0 : index
      %69 = vector.load %arg7[%c0_40, %c0_41] : memref<8x1xf32, #tpu.memory_space<vmem>>, vector<8x1xf32>
      tpu.vector_store %arg7[%c0_40, %c0_41], %68 {strides = array<i32>} : memref<8x1xf32, #tpu.memory_space<vmem>>, vector<8x1xf32>,
      %cst_42 = arith.constant 0.000000e+00 : f32
      %70 = vector.broadcast %cst_42 : f32 to vector<8x1xf32>
      %c0_43 = arith.constant 0 : index
      %c0_44 = arith.constant 0 : index
      %71 = vector.load %arg8[%c0_43, %c0_44] : memref<8x1xf32, #tpu.memory_space<vmem>>, vector<8x1xf32>
      tpu.vector_store %arg8[%c0_43, %c0_44], %70 {strides = array<i32>} : memref<8x1xf32, #tpu.memory_space<vmem>>, vector<8x1xf32>,
    } else {
    }
    %c0 = arith.constant 0 : index
    %c0_1 = arith.constant 0 : index
    %3 = vector.load %arg4[%c0, %c0_1] : memref<8x1xi32, #tpu.memory_space<vmem>>, vector<8x1xi32>
    %c0_2 = arith.constant 0 : index
    %c0_3 = arith.constant 0 : index
    %4 = vector.load %arg9[%c0_2, %c0_3] : memref<8x32xbf16, #tpu.memory_space<vmem>>, vector<8x32xbf16>
    %c0_4 = arith.constant 0 : index
    %c0_5 = arith.constant 0 : index
    %5 = vector.load %arg3[%c0_4, %c0_5] : memref<32x128xbf16, #tpu.memory_space<vmem>>, vector<32x128xbf16>
    %cst = arith.constant dense<0.000000e+00> : vector<8x128xf32>
    %6 = tpu.matmul %4, %5, %cst {dimension_numbers = #tpu.dot_dimension_numbers<[1], [0], [0], [1], [0, 0, 1, 1], [], []>} : vector<8x32xbf16>, vector<32x128xbf16>, vector<8x128xf32> -> vector<8x128xf32>
    %7 = tpu.iota {dimensions = array<i32: 1>} : vector<8x128xi32>
    %c128_i32 = arith.constant 128 : i32
    %8 = arith.muli %arg1, %c128_i32 : i32
    %9 = vector.broadcast %8 : i32 to vector<8x1xi32>
    %10 = arith.subi %3, %9 : vector<8x1xi32>
    %11 = vector.broadcast %10 : vector<8x1xi32> to vector<8x128xi32>
    %12 = arith.cmpi eq, %7, %11 : vector<8x128xi32>
    %cst_6 = arith.constant 3.500000e-01 : f32
    %13 = vector.broadcast %cst_6 : f32 to vector<8x128xf32>
    %14 = arith.subf %6, %13 : vector<8x128xf32>
    %15 = arith.select %12, %14, %6 : vector<8x128xi1>, vector<8x128xf32>
    %cst_7 = arith.constant 6.400000e+01 : f32
    %16 = vector.broadcast %cst_7 : f32 to vector<8x128xf32>
    %17 = arith.mulf %15, %16 : vector<8x128xf32>
    %c128_i32_8 = arith.constant 128 : i32
    %18 = arith.muli %arg1, %c128_i32_8 : i32
    %19 = tpu.iota {dimensions = array<i32: 1>} : vector<1x128xi32>
    %20 = vector.broadcast %18 : i32 to vector<1x128xi32>
    %21 = arith.addi %20, %19 : vector<1x128xi32>
    %c16_i32 = arith.constant 16 : i32
    %22 = vector.broadcast %c16_i32 : i32 to vector<1x128xi32>
    %23 = arith.cmpi slt, %21, %22 : vector<1x128xi32>
    %cst_9 = arith.constant -1.000000e+30 : f32
    %24 = vector.shape_cast %23 : vector<1x128xi1> to vector<1x128xi1>
    %25 = vector.broadcast %24 : vector<1x128xi1> to vector<8x128xi1>
    %26 = vector.broadcast %cst_9 : f32 to vector<8x128xf32>
    %27 = arith.select %25, %17, %26 : vector<8x128xi1>, vector<8x128xf32>
    %cst_10 = arith.constant dense<0xFF800000> : vector<8xf32>
    %28 = vector.multi_reduction <maximumf>, %27, %cst_10 [1] : vector<8x128xf32> to vector<8xf32>
    %29 = vector.shape_cast %28 : vector<8xf32> to vector<8x1xf32>
    %c0_11 = arith.constant 0 : index
    %c0_12 = arith.constant 0 : index
    %30 = vector.load %arg6[%c0_11, %c0_12] : memref<8x1xf32, #tpu.memory_space<vmem>>, vector<8x1xf32>
    %31 = arith.maximumf %30, %29 : vector<8x1xf32>
    %c0_13 = arith.constant 0 : index
    %c0_14 = arith.constant 0 : index
    %32 = vector.load %arg6[%c0_13, %c0_14] : memref<8x1xf32, #tpu.memory_space<vmem>>, vector<8x1xf32>
    %33 = arith.subf %32, %31 : vector<8x1xf32>
    %34 = math.exp %33 : vector<8x1xf32>
    %c0_15 = arith.constant 0 : index
    %c0_16 = arith.constant 0 : index
    %35 = vector.load %arg7[%c0_15, %c0_16] : memref<8x1xf32, #tpu.memory_space<vmem>>, vector<8x1xf32>
    %36 = arith.mulf %34, %35 : vector<8x1xf32>
    %37 = vector.broadcast %31 : vector<8x1xf32> to vector<8x128xf32>
    %38 = arith.subf %27, %37 : vector<8x128xf32>
    %39 = math.exp %38 : vector<8x128xf32>
    %cst_17 = arith.constant dense<0.000000e+00> : vector<8xf32>
    %40 = vector.multi_reduction <add>, %39, %cst_17 [1] : vector<8x128xf32> to vector<8xf32>
    %41 = vector.shape_cast %40 : vector<8xf32> to vector<8x1xf32>
    %42 = arith.addf %36, %41 : vector<8x1xf32>
    %c0_18 = arith.constant 0 : index
    %c0_19 = arith.constant 0 : index
    %43 = vector.load %arg7[%c0_18, %c0_19] : memref<8x1xf32, #tpu.memory_space<vmem>>, vector<8x1xf32>
    tpu.vector_store %arg7[%c0_18, %c0_19], %42 {strides = array<i32>} : memref<8x1xf32, #tpu.memory_space<vmem>>, vector<8x1xf32>,
    %c0_20 = arith.constant 0 : index
    %c0_21 = arith.constant 0 : index
    %44 = vector.load %arg6[%c0_20, %c0_21] : memref<8x1xf32, #tpu.memory_space<vmem>>, vector<8x1xf32>
    tpu.vector_store %arg6[%c0_20, %c0_21], %31 {strides = array<i32>} : memref<8x1xf32, #tpu.memory_space<vmem>>, vector<8x1xf32>,
    %c0_22 = arith.constant 0 : index
    %c0_23 = arith.constant 0 : index
    %45 = vector.load %arg8[%c0_22, %c0_23] : memref<8x1xf32, #tpu.memory_space<vmem>>, vector<8x1xf32>
    %cst_24 = arith.constant 0.000000e+00 : f32
    %46 = vector.broadcast %cst_24 : f32 to vector<8x128xf32>
    %47 = arith.select %12, %27, %46 : vector<8x128xi1>, vector<8x128xf32>
    %cst_25 = arith.constant dense<0.000000e+00> : vector<8xf32>
    %48 = vector.multi_reduction <add>, %47, %cst_25 [1] : vector<8x128xf32> to vector<8xf32>
    %49 = vector.shape_cast %48 : vector<8xf32> to vector<8x1xf32>
    %50 = arith.addf %45, %49 : vector<8x1xf32>
    %c0_26 = arith.constant 0 : index
    %c0_27 = arith.constant 0 : index
    %51 = vector.load %arg8[%c0_26, %c0_27] : memref<8x1xf32, #tpu.memory_space<vmem>>, vector<8x1xf32>
    tpu.vector_store %arg8[%c0_26, %c0_27], %50 {strides = array<i32>} : memref<8x1xf32, #tpu.memory_space<vmem>>, vector<8x1xf32>,
    %c0_i32_28 = arith.constant 0 : i32
    %52 = arith.cmpi eq, %arg1, %c0_i32_28 : i32
    %53 = arith.extui %52 : i1 to i32
    %c0_i32_29 = arith.constant 0 : i32
    %54 = arith.cmpi ne, %53, %c0_i32_29 : i32
    scf.if %54 {
      %c0_30 = arith.constant 0 : index
      %c0_31 = arith.constant 0 : index
      %55 = vector.load %arg6[%c0_30, %c0_31] : memref<8x1xf32, #tpu.memory_space<vmem>>, vector<8x1xf32>
      %c0_32 = arith.constant 0 : index
      %c0_33 = arith.constant 0 : index
      %56 = vector.load %arg7[%c0_32, %c0_33] : memref<8x1xf32, #tpu.memory_space<vmem>>, vector<8x1xf32>
      %57 = math.log %56 : vector<8x1xf32>
      %58 = arith.addf %55, %57 : vector<8x1xf32>
      %c0_34 = arith.constant 0 : index
      %c0_35 = arith.constant 0 : index
      %59 = vector.load %arg8[%c0_34, %c0_35] : memref<8x1xf32, #tpu.memory_space<vmem>>, vector<8x1xf32>
      %60 = arith.subf %58, %59 : vector<8x1xf32>
      %61 = vector.shape_cast %60 : vector<8x1xf32> to vector<8x1xf32>
      %62 = vector.broadcast %61 : vector<8x1xf32> to vector<8x128xf32>
      %c0_36 = arith.constant 0 : index
      %c0_37 = arith.constant 0 : index
      %63 = vector.load %arg5[%c0_36, %c0_37] : memref<8x128xf32, #tpu.memory_space<vmem>>, vector<8x128xf32>
      tpu.vector_store %arg5[%c0_36, %c0_37], %62 {strides = array<i32>} : memref<8x128xf32, #tpu.memory_space<vmem>>, vector<8x128xf32>,
    } else {
    }
    return
  }
  func.func @transform_0(%arg0: i32, %arg1: i32) -> (i32, i32) {
    %c0_i32 = arith.constant 0 : i32
    %c0_i32_0 = arith.constant 0 : i32
    return %arg0, %c0_i32 : i32, i32
  }
  func.func @transform_1(%arg0: i32, %arg1: i32) -> (i32, i32) {
    %c0_i32 = arith.constant 0 : i32
    %c0_i32_0 = arith.constant 0 : i32
    return %c0_i32, %arg1 : i32, i32
  }
  func.func @transform_2(%arg0: i32, %arg1: i32) -> (i32, i32) {
    %c0_i32 = arith.constant 0 : i32
    %c0_i32_0 = arith.constant 0 : i32
    return %arg0, %c0_i32 : i32, i32
  }
  func.func @transform_3(%arg0: i32, %arg1: i32) -> (i32, i32) {
    %c0_i32 = arith.constant 0 : i32
    %c0_i32_0 = arith.constant 0 : i32
    return %arg0, %c0_i32 : i32, i32
  }
}

</mosaic_0001>

<llo_original>
// kernel: tpu_custom_call.1
$region0: #{tpu_custom_call.1}
  #allocation0 [shape = 'u32[]', space=smem, size = 0x4, offset = 0x4, fixed_abs, tag = 'smem constant byte address 0x4 - core index']
  #allocation1 [shape = 'u32[72,128]{1,0:T(1,128)}', space=vmem, size = 0x9000, scoped, tag = 'internal scratch']
  #allocation2 [shape = 'f32[8,1]{1,0:T(8,128)}', space=vmem, size = 0x1000, scoped, tag = 'scratch operand']
  #allocation3 [shape = 'f32[8,1]{1,0:T(8,128)}', space=vmem, size = 0x1000, scoped, tag = 'scratch operand']
  #allocation4 [shape = 'f32[8,1]{1,0:T(8,128)}', space=vmem, size = 0x1000, scoped, tag = 'scratch operand']
  #allocation5 [shape = 'bf16[8,32]{1,0:T(8,128)(2,1)}', space=vmem, size = 0x800, scoped, tag = 'scratch operand']
  %s0 = inlined_call_operand.vmem [shape: f32[8,32], index: 0, kind: input, shape index: {}]
  %s1 = inlined_call_operand.hbm [shape: bf16[32,128], index: 1, kind: input, shape index: {}]
  %s2 = inlined_call_operand.vmem [shape: s32[8,1], index: 2, kind: input, shape index: {}]
  %s3 = inlined_call_operand.hbm [shape: f32[8,128], index: 3, kind: output, shape index: {}]
  %s4 = sld [smem:[#allocation0]]
  $region34: #{tpu_custom_call.1} parent=0
    _
  %s6 = ssub.s32 1, %s4
  %s7 = scalar_select 0, %s6, %s4
  $region1: #{tpu_custom_call.1} parent=0
    #allocation6 [shape = 'u8[8192]{0}', space=vmem, size = 0x2000, scoped, tag = 'input window, operand 1, single buffered']
    #allocation7 [shape = 's32[1]{0}', space=sflag, size = 0x4, scoped, tag = 'scoped memory for tpu_custom_call.1']
    #allocation8 [shape = 's32[1]{0}', space=sflag, size = 0x4, scoped, tag = 'scoped memory for tpu_custom_call.1']
    #allocation9 [shape = 'u8[4096]{0}', space=vmem, size = 0x1000, scoped, tag = 'output window, operand 0, single buffered']
    %8 = vsyncpa [#allocation7], 0
    %9 = vsyncpa [#allocation8], 0
    // Predicated region
    $region2: #{tpu_custom_call.1} parent=1 // pred_check
      _
    $region3: #{tpu_custom_call.1} parent=1 // pred_check_branch
      %11 = sbr.rel (0) target = $region5
    $region4: #{tpu_custom_call.1} parent=1 // pred_region
      _
    $region5: #{tpu_custom_call.1} parent=1 // pred_fallthru
      _
    // Predicated region
    $region6: #{tpu_custom_call.1} parent=1 // pred_check
      _
    $region7: #{tpu_custom_call.1} parent=1 // pred_check_branch
      %13 = sbr.rel (0) target = $region9
    $region8: #{tpu_custom_call.1} parent=1 // pred_region
      %15 = vsyncadd [#allocation7], 0
      %s16 = sshll.u32 %s1, 4
      %s17 = int_to_ptr.hbm [resolvable:$true] %s16
      %s18 = sshll.u32 [#allocation6], 4
      %s19 = int_to_ptr.vmem [resolvable:$true] %s18
      %24 = dma.hbm_to_vmem [thread:$0]  %s17, 256, %s19, [#allocation7], 64, 64, 4
    $region9: #{tpu_custom_call.1} parent=1 // pred_fallthru
      _
    // Predicated region
    $region10: #{tpu_custom_call.1} parent=1 // pred_check
      _
    $region11: #{tpu_custom_call.1} parent=1 // pred_check_branch
      %26 = sbr.rel (0) target = $region13
    $region12: #{tpu_custom_call.1} parent=1 // pred_region
      _
    $region13: #{tpu_custom_call.1} parent=1 // pred_fallthru
      _
    // Predicated region
    $region14: #{tpu_custom_call.1} parent=1 // pred_check
      _
    $region15: #{tpu_custom_call.1} parent=1 // pred_check_branch
      %28 = sbr.rel (0) target = $region17
    $region16: #{tpu_custom_call.1} parent=1 // pred_region
      %30 = dma.done [#allocation7], 256
    $region17: #{tpu_custom_call.1} parent=1 // pred_fallthru
      _
    %p32 = scmp.eq.s32.totalorder 0, 0
    // Predicated region
    $region18: #{tpu_custom_call.1} parent=1 // pred_check
      %p33 = pneg %p32
    $region19: #{tpu_custom_call.1} parent=1 // pred_check_branch
      %35 = sbr.rel (%p33) target = $region21
    $region20: #{tpu_custom_call.1} parent=1 // pred_region
      %v36 = vld [vmem:[%s0] sm:$0xff]
      %v37 = vmul.f32 %v36, %v36
      %vm38 = vcmask 261120
      %v39 = vsel %vm38, %v37, 0.0
      %40 = vadd.xlane.f32.xlu0 %v39
      %v41 = vpop.xlane.xlu0 %40
      %v42 = vmax.f32 %v41, 1e-24
      %v43 = vrsqrt.pop %v42
      %v44 = vmul.f32 %v43, %v42
      %v45 = vmul.f32 %v44, %v43
      %v46 = vmul.f32 0.5, %v45
      %v47 = vsub.f32 1.5, %v46
      %v48 = vmul.f32 %v43, %v47
      %vm49 = vweird.f32 %v42
      %vm50 = vweird.f32 %v43
      %vm51 = vmor %vm49, %vm50
      %v52 = vsel %vm51, %v43, %v48
      %v53 = vmul.f32 %v36, %v52
      %v54 = vpack.c.bf16 %v53, %v53
      %vm55 = vcmask 257024
      %56 = vst.msk [vmem:[#allocation5] sm:$0xf] %vm55, %v54
      %vm57 = vcmask 7168
      %58 = vst.msk [vmem:[#allocation2] sm:$0xff] %vm57, -1e+30
      %59 = vst.msk [vmem:[#allocation3] sm:$0xff] %vm57, 0.0
      %60 = vst.msk [vmem:[#allocation4] sm:$0xff] %vm57, 0.0
    $region21: #{tpu_custom_call.1} parent=1 // pred_fallthru
      _
    %v61 = vld [vmem:[%s2] sm:$0xff]
    %v62 = vld [vmem:[#allocation5] sm:$0xf]
    %v63 = vld [vmem:[#allocation6] sm:$0xf]
    %v64 = vld [vmem:[#allocation6 + $0x4] sm:$0xf]
    %v65 = vld [vmem:[#allocation6 + $0x8] sm:$0xf]
    %v66 = vld [vmem:[#allocation6 + $0xc] sm:$0xf]
    %v71 = vunpack.c.l.b16 %v63
    %v72 = vunpack.c.l.b16 %v64
    %v73 = vunpack.c.l.b16 %v65
    %v74 = vunpack.c.l.b16 %v66
    %v75 = vpack.c.b16 %v72, %v71
    %v76 = vpack.c.b16 %v74, %v73
    %vm79 = vcmask 261120
    %v81 = vsel %vm79, %v62, 0
    %83 = vmatpush.bf16.msra.mxu0 0
    %84 = vmatpush.bf16.msra.mxu0 0
    %85 = vmatpush.bf16.msra.mxu0 0
    %86 = vmatpush.bf16.msra.mxu0 0
    %87 = vmatpush.bf16.msra.mxu0 0
    %88 = vmatpush.bf16.msra.mxu0 0
    %89 = vmatpush.bf16.msra.mxu0 %v76
    %90 = vmatpush.bf16.msra.mxu0 %v75
    %91 = vmatmul.bf16.gmra.mxu0 %v81
    %v92 = vpop.f32.mrf.mxu0
    %v93 = vadd.f32 0.0, %v92
    %v94 = vpop.f32.mrf.mxu0
    %95 = vdwg.mxu0
    %v96 = vlaneseq
    %v97 = vand.u32 %v96, 127
    %s98 = smul.u32 0, 128
    %v99 = vstv %s98
    %v100 = vsub.s32 %v61, %v99
    %101 = vset.pattern.permute.xlu0 0
    %102 = vperm.xlu0 %101, %v100
    %v103 = vpop.permute.xlu0 %102
    %vm104 = vcmp.eq.s32.totalorder %v97, %v103
    %v105 = vsub.f32 %v93, 0.35
    %v106 = vsel %vm104, %v105, %v93
    %v107 = vmul.f32 %v106, 64.0
    %v108 = vadd.s32 %v99, %v97
    %vm109 = vcmp.lt.s32.totalorder %v108, 16
    %v110 = vsel %vm109, 1, 0
    %vm111 = vcmp.eq.s32.totalorder %v110, 1
    %v112 = vsel %vm111, %v107, -1e+30
    %113 = vmax.xlane.f32.xlu0 %v112
    %v114 = vpop.xlane.xlu0 %113
    %v115 = vld [vmem:[#allocation2] sm:$0xff]
    %v116 = vmax.f32 %v115, %v114
    %v117 = vsub.f32 %v115, %v116
    %v118 = vmul.f32 %v117, 1.442695
    %v119 = vpow.pop %v118
    %v120 = vld [vmem:[#allocation3] sm:$0xff]
    %v121 = vmul.f32 %v119, %v120
    %123 = vset.pattern.permute.xlu0 0
    %124 = vperm.xlu0 %123, %v116
    %v125 = vpop.permute.xlu0 %124
    %v127 = vsub.f32 %v112, %v125
    %v128 = vmul.f32 %v127, 1.442695
    %v129 = vpow.pop %v128
    %130 = vadd.xlane.f32.xlu0 %v129
    %v131 = vpop.xlane.xlu0 %130
    %v132 = vadd.f32 %v121, %v131
    %vm133 = vcmask 7168
    %134 = vst.msk [vmem:[#allocation3] sm:$0xff] %vm133, %v132
    %135 = vst.msk [vmem:[#allocation2] sm:$0xff] %vm133, %v116
    %v136 = vld [vmem:[#allocation4] sm:$0xff]
    %v137 = vsel %vm104, %v112, 0.0
    %138 = vadd.xlane.f32.xlu0 %v137
    %v139 = vpop.xlane.xlu0 %138
    %v140 = vadd.f32 %v136, %v139
    %141 = vst.msk [vmem:[#allocation4] sm:$0xff] %vm133, %v140
    // Predicated region
    $region22: #{tpu_custom_call.1} parent=1 // pred_check
      %p142 = pneg %p32
    $region23: #{tpu_custom_call.1} parent=1 // pred_check_branch
      %144 = sbr.rel (%p142) target = $region25
    $region24: #{tpu_custom_call.1} parent=1 // pred_region
      %v145 = vld [vmem:[#allocation2] sm:$0xff]
      %v146 = vld [vmem:[#allocation3] sm:$0xff]
      %v147 = vlog2.pop %v146
      %v148 = vmul.f32 %v147, 0.6931472
      %v149 = vadd.f32 %v145, %v148
      %v150 = vld [vmem:[#allocation4] sm:$0xff]
      %v151 = vsub.f32 %v149, %v150
      %153 = vset.pattern.permute.xlu0 0
      %154 = vperm.xlu0 %153, %v151
      %v155 = vpop.permute.xlu0 %154
      %157 = vst [vmem:[#allocation9] sm:$0xff] %v155
    $region25: #{tpu_custom_call.1} parent=1 // pred_fallthru
      _
    // Predicated region
    $region26: #{tpu_custom_call.1} parent=1 // pred_check
      _
    $region27: #{tpu_custom_call.1} parent=1 // pred_check_branch
      %159 = sbr.rel (0) target = $region29
    $region28: #{tpu_custom_call.1} parent=1 // pred_region
      %161 = vsyncadd [#allocation8], 0
      %s163 = sshll.u32 [#allocation9], 4
      %s164 = int_to_ptr.vmem [resolvable:$true] %s163
      %s165 = sshll.u32 %s3, 4
      %s166 = int_to_ptr.hbm [resolvable:$true] %s165
      %168 = dma.vmem_to_hbm [thread:$0]  %s164, 128, %s166, [#allocation8]
    $region29: #{tpu_custom_call.1} parent=1 // pred_fallthru
      _
    // Predicated region
    $region30: #{tpu_custom_call.1} parent=1 // pred_check
      _
    $region31: #{tpu_custom_call.1} parent=1 // pred_check_branch
      %170 = sbr.rel (0) target = $region33
    $region32: #{tpu_custom_call.1} parent=1 // pred_region
      %172 = dma.done [#allocation8], 128
    $region33: #{tpu_custom_call.1} parent=1 // pred_fallthru
      _
    %173 = vsyncpa [#allocation7], 1
    %174 = vsyncpa [#allocation8], 1

</llo_original>
